<compile_context>
chip_gen: v7x
topology: tpu7x:2x2x1
jax: 0.10.0
libtpu: 0.0.40
codegen_flags: <defaults>
</compile_context>

<pallas_src>
import functools

import jax
import jax.numpy as jnp
from jax.experimental import pallas as pl
from jax.experimental.pallas import tpu as pltpu


def _round_up(x: int, m: int) -> int:
    return ((x + m - 1) // m) * m


# ----------------------------------------------------------------------------
# Pallas kernel: GMF + MLP + NeuMF head (transposed, lane-dense layout)
# ----------------------------------------------------------------------------
def ncf_kernel(
    ug_ref,                      # (2*mf_or_mlp, TB) bf16: [mf_user ; mlp_user]
    ig_ref,                      # (2*mf_or_mlp, TB) bf16: [mlp_item ; mf_item]
    w0a_ref, w0b_ref, b0_ref,    # (L0, mlp_dim) bf16 x2, (L0, 1) f32
    w1_ref, b1_ref,              # (L1, L0) bf16, (L1, 1) f32
    w2_ref, b2_ref,              # (L2, L1) bf16, (L2, 1) f32
    wng_ref, wnm_ref, bn_ref,    # (mf_dim, 1), (L2, 1), (1, 1) f32
    out_ref,                     # (1, TB) f32
    *, mf_dim: int, mlp_dim: int,
):
    f32 = jnp.float32
    bf16 = jnp.bfloat16

    # Slice the bf16 refs directly (16-row aligned) -- no full-slab f32 copy.
    mf_u = ug_ref[:mf_dim, :]                 # (16, TB) bf16
    mlp_u = ug_ref[mf_dim:, :]                # (16, TB) bf16
    mlp_i = ig_ref[:mlp_dim, :]               # (16, TB) bf16
    mf_i = ig_ref[mlp_dim:, :]                # (16, TB) bf16

    # --- GMF branch: elementwise product (VPU).  Cast only these 32 rows to
    #     f32 (v5e has no bf16 VALU); accumulation in the head is f32 anyway.
    gmf = mf_u.astype(f32) * mf_i.astype(f32)             # (16, TB) f32

    # --- MLP branch: y = W @ x + b, lane-dense (feat, TB), bf16 MXU pushes,
    #     f32 accumulation.  W0 is pre-split so the [u;i] concat never exists.
    h = (jnp.dot(w0a_ref[...], mlp_u, preferred_element_type=f32)
         + jnp.dot(w0b_ref[...], mlp_i, preferred_element_type=f32)
         + b0_ref[...])
    h = jnp.maximum(h, 0.0)                                # (L0, TB) f32
    h = jnp.dot(w1_ref[...], h.astype(bf16),
                preferred_element_type=f32) + b1_ref[...]
    h = jnp.maximum(h, 0.0)                                # (L1, TB) f32
    h = jnp.dot(w2_ref[...], h.astype(bf16),
                preferred_element_type=f32) + b2_ref[...]
    h = jnp.maximum(h, 0.0)                                # (L2, TB) f32

    # --- NeuMF head: VPU broadcast-mul + sublane (XLU) reduce; no N=1 matmul.
    logits = (
        jnp.sum(wng_ref[...] * gmf, axis=0, keepdims=True)
        + jnp.sum(wnm_ref[...] * h, axis=0, keepdims=True)
        + bn_ref[...]
    )                                                      # (1, TB) f32
    out_ref[...] = logits.astype(out_ref.dtype)


# ----------------------------------------------------------------------------
# Wrapper: tiling, BlockSpecs, weight prep
# ----------------------------------------------------------------------------
def ncf_forward_pallas(ug, ig, params, *, mf_dim=16, mlp_dim=16, tb=8192):
    """ug: (2*mlp_dim, B) bf16 user gather, ig: (2*mlp_dim, B) bf16 item gather."""
    Fu, B = ug.shape
    Fi, _ = ig.shape

    # Batch tile: multiple of 128 lanes, capped at `tb`.  If one tile would
    # cover the whole batch, halve it so the "parallel" grid has >=2 steps
    # (keeps both v7x TensorCores busy); per-tile working set at TB=8192 is
    # well under 16 MiB, so this fits every generation.
    b_pad_min = _round_up(B, 128)
    tile = max(128, min(_round_up(tb, 128), b_pad_min))
    if tile >= b_pad_min and b_pad_min >= 256:
        tile = _round_up((b_pad_min + 1) // 2, 128)
    b_pad = _round_up(B, tile)
    if b_pad != B:
        ug = jnp.pad(ug, ((0, 0), (0, b_pad - B)))
        ig = jnp.pad(ig, ((0, 0), (0, b_pad - B)))
    grid = (b_pad // tile,)

    # Weight prep: bf16 operands for every MXU push; biases / head stay f32.
    bf16 = jnp.bfloat16
    w0 = params["w0"]
    w0a = w0[:, :mlp_dim].astype(bf16)
    w0b = w0[:, mlp_dim:].astype(bf16)
    w1 = params["w1"].astype(bf16)
    w2 = params["w2"].astype(bf16)
    weights = (
        w0a, w0b, params["b0"],
        w1, params["b1"],
        w2, params["b2"],
        params["wn_gmf"], params["wn_mlp"], params["bn"],
    )

    def const_spec(arr):
        # Same block every grid step -> stays resident in VMEM.
        return pl.BlockSpec(arr.shape, lambda i: (0, 0))

    in_specs = [
        pl.BlockSpec((Fu, tile), lambda i: (0, i)),
        pl.BlockSpec((Fi, tile), lambda i: (0, i)),
    ]
    in_specs += [const_spec(w) for w in weights]

    kernel = functools.partial(ncf_kernel, mf_dim=mf_dim, mlp_dim=mlp_dim)

    out = pl.pallas_call(
        kernel,
        out_shape=jax.ShapeDtypeStruct((1, b_pad), jnp.float32),
        grid=grid,
        in_specs=in_specs,
        out_specs=pl.BlockSpec((1, tile), lambda i: (0, i)),
        compiler_params=pltpu.CompilerParams(
            dimension_semantics=("parallel",),
            vmem_limit_bytes=32 * 1024 * 1024,   # covers v5e's 16 MiB default
        ),
    )(ug, ig, *weights)
    return out[0, :B]


# ----------------------------------------------------------------------------
# Parameter construction (deterministic xavier-uniform init, like _init_weights)
# ----------------------------------------------------------------------------
def _xavier(key, fan_in, fan_out, shape):
    bound = (6.0 / (fan_in + fan_out)) ** 0.5
    return jax.random.uniform(key, shape, jnp.float32, -bound, bound)


def init_ncf_params(key, n_users, n_items, mf_dim=16,
                    mlp_layers=(32, 16, 8), mlp_embedding_dim=16):
    keys = jax.random.split(key, 8)
    params = {}

    # Embedding tables, stored transposed + stacked, bf16 (halves HBM read
    # bytes on the gather path).
    mf_user = _xavier(keys[0], mf_dim, n_users, (n_users, mf_dim))
    mf_item = _xavier(keys[1], mf_dim, n_items, (n_items, mf_dim))
    mlp_user = _xavier(keys[2], mlp_embedding_dim, n_users,
                       (n_users, mlp_embedding_dim))
    mlp_item = _xavier(keys[3], mlp_embedding_dim, n_items,
                       (n_items, mlp_embedding_dim))
    # user table rows: [mf_user ; mlp_user], item table rows: [mlp_item ; mf_item]
    params["user_table"] = jnp.concatenate(
        [mf_user.T, mlp_user.T], axis=0).astype(jnp.bfloat16)
    params["item_table"] = jnp.concatenate(
        [mlp_item.T, mf_item.T], axis=0).astype(jnp.bfloat16)

    # MLP weights, PyTorch (out, in) layout -> directly W @ x.
    L0, L1, L2 = mlp_layers
    params["w0"] = _xavier(keys[4], 2 * mlp_embedding_dim, L0,
                           (L0, 2 * mlp_embedding_dim))
    params["b0"] = jnp.zeros((L0, 1), jnp.float32)
    params["w1"] = _xavier(keys[5], L0, L1, (L1, L0))
    params["b1"] = jnp.zeros((L1, 1), jnp.float32)
    params["w2"] = _xavier(keys[6], L1, L2, (L2, L1))
    params["b2"] = jnp.zeros((L2, 1), jnp.float32)

    # NeuMF head: in = mf_dim + L2, split into gmf-half / mlp-half.
    wn = _xavier(keys[7], mf_dim + L2, 1, (1, mf_dim + L2))
    params["wn_gmf"] = wn[0, :mf_dim].reshape(mf_dim, 1)
    params["wn_mlp"] = wn[0, mf_dim:].reshape(L2, 1)
    params["bn"] = jnp.zeros((1, 1), jnp.float32)
    return params


def ncf_apply(params, user_indices, item_indices, *,
              mf_dim=16, mlp_dim=16, tb=8192):
    # Embedding gathers (plain-JAX glue); tables are pre-transposed so the
    # gathered slabs are lane-dense (features on sublanes, batch on lanes).
    # The two slabs are passed straight to the kernel -- no concat round-trip.
    ug = jnp.take(params["user_table"], user_indices, axis=1)   # (32, B) bf16
    ig = jnp.take(params["item_table"], item_indices, axis=1)   # (32, B) bf16
    return ncf_forward_pallas(ug, ig, params, mf_dim=mf_dim,
                              mlp_dim=mlp_dim, tb=tb)


def ncf_reference(params, user_indices, item_indices, *, mf_dim=16, mlp_dim=16):
    """Pure-JAX reference of the PyTorch forward (eval mode), f32 math."""
    ut = params["user_table"].astype(jnp.float32)
    it = params["item_table"].astype(jnp.float32)
    ug = jnp.take(ut, user_indices, axis=1)
    ig = jnp.take(it, item_indices, axis=1)
    mf_u = ug[:mf_dim].T
    mlp_u = ug[mf_dim:].T
    mlp_i = ig[:mlp_dim].T
    mf_i = ig[mlp_dim:].T

    gmf = mf_u * mf_i
    x = jnp.concatenate([mlp_u, mlp_i], axis=-1)
    x = jnp.maximum(x @ params["w0"].T + params["b0"].T, 0.0)
    x = jnp.maximum(x @ params["w1"].T + params["b1"].T, 0.0)
    x = jnp.maximum(x @ params["w2"].T + params["b2"].T, 0.0)
    z = jnp.concatenate([gmf, x], axis=-1)
    wn = jnp.concatenate([params["wn_gmf"], params["wn_mlp"]], axis=0)
    logits = z @ wn + params["bn"]
    return logits[:, 0]


if __name__ == "__main__":
    n_users, n_items = 64, 128
    batch = 300           # with the default tile logic -> tile=256, 2-step grid

    key = jax.random.PRNGKey(0)
    pkey, ukey, ikey = jax.random.split(key, 3)
    params = init_ncf_params(pkey, n_users, n_items)

    user_idx = jax.random.randint(ukey, (batch,), 0, n_users, dtype=jnp.int32)
    item_idx = jax.random.randint(ikey, (batch,), 0, n_items, dtype=jnp.int32)

    logits = jax.block_until_ready(ncf_apply(params, user_idx, item_idx))
    ref = jax.block_until_ready(ncf_reference(params, user_idx, item_idx))

    assert logits.shape == (batch,)
    # Kernel uses bf16 MXU operands (weights + inter-layer activations) with
    # f32 accumulation; reference is f32 -> allow bf16-level tolerance.
    assert jnp.allclose(logits, ref, atol=1e-2, rtol=1e-2), (logits, ref)
    print("KERNEL_OK")
</pallas_src>

<mosaic_0001>
module attributes {stable_mosaic.version = 11 : i64} {
  func.func @ncf_kernel(%arg0: i32, %arg1: memref<32x256xbf16, #tpu.memory_space<vmem>>, %arg2: memref<32x256xbf16, #tpu.memory_space<vmem>>, %arg3: memref<32x16xbf16, #tpu.memory_space<vmem>>, %arg4: memref<32x16xbf16, #tpu.memory_space<vmem>>, %arg5: memref<32x1xf32, #tpu.memory_space<vmem>>, %arg6: memref<16x32xbf16, #tpu.memory_space<vmem>>, %arg7: memref<16x1xf32, #tpu.memory_space<vmem>>, %arg8: memref<8x16xbf16, #tpu.memory_space<vmem>>, %arg9: memref<8x1xf32, #tpu.memory_space<vmem>>, %arg10: memref<16x1xf32, #tpu.memory_space<vmem>>, %arg11: memref<8x1xf32, #tpu.memory_space<vmem>>, %arg12: memref<1x1xf32, #tpu.memory_space<vmem>>, %arg13: memref<1x256xf32, #tpu.memory_space<vmem>>) attributes {dimension_semantics = [#tpu.dimension_semantics<parallel>], iteration_bounds = array<i64: 2>, scalar_prefetch = 0 : i64, scratch_operands = 0 : i64, tpu.core_type = #tpu.core_type<tc>, window_params = [{transform_indices = @transform_0, window_bounds = array<i64: 32, 256>}, {transform_indices = @transform_1, window_bounds = array<i64: 32, 256>}, {pipeline_mode = #tpu.pipeline_mode<synchronous>, transform_indices = @transform_2, window_bounds = array<i64: 32, 16>}, {pipeline_mode = #tpu.pipeline_mode<synchronous>, transform_indices = @transform_3, window_bounds = array<i64: 32, 16>}, {pipeline_mode = #tpu.pipeline_mode<synchronous>, transform_indices = @transform_4, window_bounds = array<i64: 32, 1>}, {pipeline_mode = #tpu.pipeline_mode<synchronous>, transform_indices = @transform_5, window_bounds = array<i64: 16, 32>}, {pipeline_mode = #tpu.pipeline_mode<synchronous>, transform_indices = @transform_6, window_bounds = array<i64: 16, 1>}, {pipeline_mode = #tpu.pipeline_mode<synchronous>, transform_indices = @transform_7, window_bounds = array<i64: 8, 16>}, {pipeline_mode = #tpu.pipeline_mode<synchronous>, transform_indices = @transform_8, window_bounds = array<i64: 8, 1>}, {pipeline_mode = #tpu.pipeline_mode<synchronous>, transform_indices = @transform_9, window_bounds = array<i64: 16, 1>}, {pipeline_mode = #tpu.pipeline_mode<synchronous>, transform_indices = @transform_10, window_bounds = array<i64: 8, 1>}, {pipeline_mode = #tpu.pipeline_mode<synchronous>, transform_indices = @transform_11, window_bounds = array<i64: 1, 1>}, {transform_indices = @transform_12, window_bounds = array<i64: 1, 256>}]} {
    %c0 = arith.constant 0 : index
    %c0_0 = arith.constant 0 : index
    %0 = vector.load %arg1[%c0, %c0_0] : memref<32x256xbf16, #tpu.memory_space<vmem>>, vector<16x256xbf16>
    %c16 = arith.constant 16 : index
    %c0_1 = arith.constant 0 : index
    %1 = vector.load %arg1[%c16, %c0_1] : memref<32x256xbf16, #tpu.memory_space<vmem>>, vector<16x256xbf16>
    %c0_2 = arith.constant 0 : index
    %c0_3 = arith.constant 0 : index
    %2 = vector.load %arg2[%c0_2, %c0_3] : memref<32x256xbf16, #tpu.memory_space<vmem>>, vector<16x256xbf16>
    %c16_4 = arith.constant 16 : index
    %c0_5 = arith.constant 0 : index
    %3 = vector.load %arg2[%c16_4, %c0_5] : memref<32x256xbf16, #tpu.memory_space<vmem>>, vector<16x256xbf16>
    %4 = arith.extf %0 : vector<16x256xbf16> to vector<16x256xf32>
    %5 = arith.extf %3 : vector<16x256xbf16> to vector<16x256xf32>
    %6 = arith.mulf %4, %5 : vector<16x256xf32>
    %c0_6 = arith.constant 0 : index
    %c0_7 = arith.constant 0 : index
    %7 = vector.load %arg3[%c0_6, %c0_7] : memref<32x16xbf16, #tpu.memory_space<vmem>>, vector<32x16xbf16>
    %cst = arith.constant dense<0.000000e+00> : vector<32x256xf32>
    %8 = tpu.matmul %7, %1, %cst {dimension_numbers = #tpu.dot_dimension_numbers<[1], [0], [0], [1], [0, 0, 1, 1], [], []>} : vector<32x16xbf16>, vector<16x256xbf16>, vector<32x256xf32> -> vector<32x256xf32>
    %c0_8 = arith.constant 0 : index
    %c0_9 = arith.constant 0 : index
    %9 = vector.load %arg4[%c0_8, %c0_9] : memref<32x16xbf16, #tpu.memory_space<vmem>>, vector<32x16xbf16>
    %cst_10 = arith.constant dense<0.000000e+00> : vector<32x256xf32>
    %10 = tpu.matmul %9, %2, %cst_10 {dimension_numbers = #tpu.dot_dimension_numbers<[1], [0], [0], [1], [0, 0, 1, 1], [], []>} : vector<32x16xbf16>, vector<16x256xbf16>, vector<32x256xf32> -> vector<32x256xf32>
    %11 = arith.addf %8, %10 : vector<32x256xf32>
    %c0_11 = arith.constant 0 : index
    %c0_12 = arith.constant 0 : index
    %12 = vector.load %arg5[%c0_11, %c0_12] : memref<32x1xf32, #tpu.memory_space<vmem>>, vector<32x1xf32>
    %13 = vector.broadcast %12 : vector<32x1xf32> to vector<32x256xf32>
    %14 = arith.addf %11, %13 : vector<32x256xf32>
    %cst_13 = arith.constant 0.000000e+00 : f32
    %15 = vector.broadcast %cst_13 : f32 to vector<32x256xf32>
    %16 = arith.maximumf %14, %15 : vector<32x256xf32>
    %c0_14 = arith.constant 0 : index
    %c0_15 = arith.constant 0 : index
    %17 = vector.load %arg6[%c0_14, %c0_15] : memref<16x32xbf16, #tpu.memory_space<vmem>>, vector<16x32xbf16>
    %18 = arith.truncf %16 : vector<32x256xf32> to vector<32x256xbf16>
    %cst_16 = arith.constant dense<0.000000e+00> : vector<16x256xf32>
    %19 = tpu.matmul %17, %18, %cst_16 {dimension_numbers = #tpu.dot_dimension_numbers<[1], [0], [0], [1], [0, 0, 1, 1], [], []>} : vector<16x32xbf16>, vector<32x256xbf16>, vector<16x256xf32> -> vector<16x256xf32>
    %c0_17 = arith.constant 0 : index
    %c0_18 = arith.constant 0 : index
    %20 = vector.load %arg7[%c0_17, %c0_18] : memref<16x1xf32, #tpu.memory_space<vmem>>, vector<16x1xf32>
    %21 = vector.broadcast %20 : vector<16x1xf32> to vector<16x256xf32>
    %22 = arith.addf %19, %21 : vector<16x256xf32>
    %cst_19 = arith.constant 0.000000e+00 : f32
    %23 = vector.broadcast %cst_19 : f32 to vector<16x256xf32>
    %24 = arith.maximumf %22, %23 : vector<16x256xf32>
    %c0_20 = arith.constant 0 : index
    %c0_21 = arith.constant 0 : index
    %25 = vector.load %arg8[%c0_20, %c0_21] : memref<8x16xbf16, #tpu.memory_space<vmem>>, vector<8x16xbf16>
    %26 = arith.truncf %24 : vector<16x256xf32> to vector<16x256xbf16>
    %cst_22 = arith.constant dense<0.000000e+00> : vector<8x256xf32>
    %27 = tpu.matmul %25, %26, %cst_22 {dimension_numbers = #tpu.dot_dimension_numbers<[1], [0], [0], [1], [0, 0, 1, 1], [], []>} : vector<8x16xbf16>, vector<16x256xbf16>, vector<8x256xf32> -> vector<8x256xf32>
    %c0_23 = arith.constant 0 : index
    %c0_24 = arith.constant 0 : index
    %28 = vector.load %arg9[%c0_23, %c0_24] : memref<8x1xf32, #tpu.memory_space<vmem>>, vector<8x1xf32>
    %29 = vector.broadcast %28 : vector<8x1xf32> to vector<8x256xf32>
    %30 = arith.addf %27, %29 : vector<8x256xf32>
    %cst_25 = arith.constant 0.000000e+00 : f32
    %31 = vector.broadcast %cst_25 : f32 to vector<8x256xf32>
    %32 = arith.maximumf %30, %31 : vector<8x256xf32>
    %c0_26 = arith.constant 0 : index
    %c0_27 = arith.constant 0 : index
    %33 = vector.load %arg10[%c0_26, %c0_27] : memref<16x1xf32, #tpu.memory_space<vmem>>, vector<16x1xf32>
    %34 = vector.broadcast %33 : vector<16x1xf32> to vector<16x256xf32>
    %35 = arith.mulf %34, %6 : vector<16x256xf32>
    %cst_28 = arith.constant dense<0.000000e+00> : vector<256xf32>
    %36 = vector.multi_reduction <add>, %35, %cst_28 [0] : vector<16x256xf32> to vector<256xf32>
    %37 = vector.shape_cast %36 : vector<256xf32> to vector<1x256xf32>
    %c0_29 = arith.constant 0 : index
    %c0_30 = arith.constant 0 : index
    %38 = vector.load %arg11[%c0_29, %c0_30] : memref<8x1xf32, #tpu.memory_space<vmem>>, vector<8x1xf32>
    %39 = vector.broadcast %38 : vector<8x1xf32> to vector<8x256xf32>
    %40 = arith.mulf %39, %32 : vector<8x256xf32>
    %cst_31 = arith.constant dense<0.000000e+00> : vector<256xf32>
    %41 = vector.multi_reduction <add>, %40, %cst_31 [0] : vector<8x256xf32> to vector<256xf32>
    %42 = vector.shape_cast %41 : vector<256xf32> to vector<1x256xf32>
    %43 = arith.addf %37, %42 : vector<1x256xf32>
    %c0_32 = arith.constant 0 : index
    %c0_33 = arith.constant 0 : index
    %44 = vector.load %arg12[%c0_32, %c0_33] : memref<1x1xf32, #tpu.memory_space<vmem>>, vector<1x1xf32>
    %45 = vector.broadcast %44 : vector<1x1xf32> to vector<1x256xf32>
    %46 = arith.addf %43, %45 : vector<1x256xf32>
    %c0_34 = arith.constant 0 : index
    %c0_35 = arith.constant 0 : index
    %47 = vector.load %arg13[%c0_34, %c0_35] : memref<1x256xf32, #tpu.memory_space<vmem>>, vector<1x256xf32>
    tpu.vector_store %arg13[%c0_34, %c0_35], %46 {strides = array<i32>} : memref<1x256xf32, #tpu.memory_space<vmem>>, vector<1x256xf32>,
    return
  }
  func.func @transform_0(%arg0: i32) -> (i32, i32) {
    %c0_i32 = arith.constant 0 : i32
    %c0_i32_0 = arith.constant 0 : i32
    return %c0_i32, %arg0 : i32, i32
  }
  func.func @transform_1(%arg0: i32) -> (i32, i32) {
    %c0_i32 = arith.constant 0 : i32
    %c0_i32_0 = arith.constant 0 : i32
    return %c0_i32, %arg0 : i32, i32
  }
  func.func @transform_2(%arg0: i32) -> (i32, i32) {
    %c0_i32 = arith.constant 0 : i32
    %c0_i32_0 = arith.constant 0 : i32
    %c0_i32_1 = arith.constant 0 : i32
    return %c0_i32, %c0_i32_0 : i32, i32
  }
  func.func @transform_3(%arg0: i32) -> (i32, i32) {
    %c0_i32 = arith.constant 0 : i32
    %c0_i32_0 = arith.constant 0 : i32
    %c0_i32_1 = arith.constant 0 : i32
    return %c0_i32, %c0_i32_0 : i32, i32
  }
  func.func @transform_4(%arg0: i32) -> (i32, i32) {
    %c0_i32 = arith.constant 0 : i32
    %c0_i32_0 = arith.constant 0 : i32
    %c0_i32_1 = arith.constant 0 : i32
    return %c0_i32, %c0_i32_0 : i32, i32
  }
  func.func @transform_5(%arg0: i32) -> (i32, i32) {
    %c0_i32 = arith.constant 0 : i32
    %c0_i32_0 = arith.constant 0 : i32
    %c0_i32_1 = arith.constant 0 : i32
    return %c0_i32, %c0_i32_0 : i32, i32
  }
  func.func @transform_6(%arg0: i32) -> (i32, i32) {
    %c0_i32 = arith.constant 0 : i32
    %c0_i32_0 = arith.constant 0 : i32
    %c0_i32_1 = arith.constant 0 : i32
    return %c0_i32, %c0_i32_0 : i32, i32
  }
  func.func @transform_7(%arg0: i32) -> (i32, i32) {
    %c0_i32 = arith.constant 0 : i32
    %c0_i32_0 = arith.constant 0 : i32
    %c0_i32_1 = arith.constant 0 : i32
    return %c0_i32, %c0_i32_0 : i32, i32
  }
  func.func @transform_8(%arg0: i32) -> (i32, i32) {
    %c0_i32 = arith.constant 0 : i32
    %c0_i32_0 = arith.constant 0 : i32
    %c0_i32_1 = arith.constant 0 : i32
    return %c0_i32, %c0_i32_0 : i32, i32
  }
  func.func @transform_9(%arg0: i32) -> (i32, i32) {
    %c0_i32 = arith.constant 0 : i32
    %c0_i32_0 = arith.constant 0 : i32
    %c0_i32_1 = arith.constant 0 : i32
    return %c0_i32, %c0_i32_0 : i32, i32
  }
  func.func @transform_10(%arg0: i32) -> (i32, i32) {
    %c0_i32 = arith.constant 0 : i32
    %c0_i32_0 = arith.constant 0 : i32
    %c0_i32_1 = arith.constant 0 : i32
    return %c0_i32, %c0_i32_0 : i32, i32
  }
  func.func @transform_11(%arg0: i32) -> (i32, i32) {
    %c0_i32 = arith.constant 0 : i32
    %c0_i32_0 = arith.constant 0 : i32
    %c0_i32_1 = arith.constant 0 : i32
    return %c0_i32, %c0_i32_0 : i32, i32
  }
  func.func @transform_12(%arg0: i32) -> (i32, i32) {
    %c0_i32 = arith.constant 0 : i32
    %c0_i32_0 = arith.constant 0 : i32
    return %c0_i32, %arg0 : i32, i32
  }
}

</mosaic_0001>

<llo_original>
// kernel: tpu_custom_call.1
$region0: #{tpu_custom_call.1}
  #allocation0 [shape = 'u32[]', space=smem, size = 0x4, offset = 0x4, fixed_abs, tag = 'smem constant byte address 0x4 - core index']
  #allocation1 [shape = 'u32[144,128]{1,0:T(1,128)}', space=vmem, size = 0x12000, scoped, tag = 'internal scratch']
  #allocation2 [shape = 'f32[1,1]{1,0:T(1,128)S(1)}', space=vmem, size = 0x200, scoped, tag = 'scoped memory for tpu_custom_call.1']
  %s0 = inlined_call_operand.vmem [shape: bf16[32,512], index: 0, kind: input, shape index: {}]
  %s1 = inlined_call_operand.vmem [shape: bf16[32,512], index: 1, kind: input, shape index: {}]
  %s2 = inlined_call_operand.vmem [shape: bf16[32,16], index: 2, kind: input, shape index: {}]
  %s3 = inlined_call_operand.vmem [shape: bf16[32,16], index: 3, kind: input, shape index: {}]
  %s4 = inlined_call_operand.vmem [shape: f32[32,1], index: 4, kind: input, shape index: {}]
  %s5 = inlined_call_operand.vmem [shape: bf16[16,32], index: 5, kind: input, shape index: {}]
  %s6 = inlined_call_operand.vmem [shape: f32[16,1], index: 6, kind: input, shape index: {}]
  %s7 = inlined_call_operand.vmem [shape: bf16[8,16], index: 7, kind: input, shape index: {}]
  %s8 = inlined_call_operand.vmem [shape: f32[8,1], index: 8, kind: input, shape index: {}]
  %s9 = inlined_call_operand.vmem [shape: f32[16,1], index: 9, kind: input, shape index: {}]
  %s10 = inlined_call_operand.vmem [shape: f32[8,1], index: 10, kind: input, shape index: {}]
  %s11 = inlined_call_operand.<no memory space> [shape: f32[1,1], index: 11, kind: input, shape index: {}]
  %s12 = inlined_call_operand.hbm [shape: f32[1,512], index: 12, kind: output, shape index: {}]
  %s13 = sld [smem:[#allocation0]]
  $region157: #{tpu_custom_call.1} parent=0
    _
  %s15 = ssub.s32 1, %s13
  %s16 = scalar_select 0, %s15, %s13
  %v17 = vstv %s11
  %18 = vst [vmem:[#allocation2] sm:$0x1] %v17
  $region1: #{tpu_custom_call.1} parent=0
    #allocation3 [shape = 'u8[32768]{0}', space=vmem, size = 0x8000, scoped, tag = 'input window, operand 0']
    #allocation4 [shape = 'u8[32768]{0}', space=vmem, size = 0x8000, scoped, tag = 'input window, operand 1']
    #allocation5 [shape = 'u8[2048]{0}', space=vmem, size = 0x800, scoped, tag = 'output window, operand 0']
    #allocation6 [shape = 's32[2]{0}', space=sflag, size = 0x8, scoped, tag = 'scoped memory for tpu_custom_call.1']
    %19 = vsyncpa [#allocation6], 0
    %s20 = scalar_lea.sflag [#allocation6], 1
    %21 = vsyncpa %s20, 0
    loop: start=0, step=1, limit=4
    $region2: #{tpu_custom_call.1} parent=1 // loop_pre_header
      _
    $region3: #{tpu_custom_call.1} parent=1 // loop_header
      %s23 = sphi 0, %s27
      %p24 = scmp.ge.s32.totalorder %s23, 4
      %s33 = sphi 0, %s35
      %s36 = sphi 0, %s33
      %s37 = sphi 0, %s36
      %s53 = sphi 0, %s37
      %s59 = sphi 0, %s61
      %s62 = sphi 0, %s59
      %s63 = sphi 0, %s62
      %s79 = sphi 0, %s63
      %s83 = sphi 0, %s83
      %s85 = sphi 0, %s83
      %s86 = sphi 0, %s85
      %s100 = sphi 0, %s86
      %s104 = sphi 0, %s104
      %s106 = sphi 0, %s104
      %s107 = sphi 0, %s106
      %s121 = sphi 0, %s107
      %s125 = sphi 0, %s125
      %s127 = sphi 0, %s125
      %s128 = sphi 0, %s127
      %s142 = sphi 0, %s128
      %s146 = sphi 0, %s146
      %s148 = sphi 0, %s146
      %s149 = sphi 0, %s148
      %s163 = sphi 0, %s149
      %s167 = sphi 0, %s167
      %s169 = sphi 0, %s167
      %s170 = sphi 0, %s169
      %s184 = sphi 0, %s170
      %s188 = sphi 0, %s188
      %s190 = sphi 0, %s188
      %s191 = sphi 0, %s190
      %s205 = sphi 0, %s191
      %s209 = sphi 0, %s209
      %s211 = sphi 0, %s209
      %s212 = sphi 0, %s211
      %s226 = sphi 0, %s212
      %s230 = sphi 0, %s230
      %s232 = sphi 0, %s230
      %s233 = sphi 0, %s232
      %s247 = sphi 0, %s233
      %s251 = sphi 0, %s251
      %s253 = sphi 0, %s251
      %s254 = sphi 0, %s253
      %s268 = sphi 0, %s254
      %s272 = sphi 0, %s272
      %s274 = sphi 0, %s272
      %s275 = sphi 0, %s274
      %s289 = sphi 0, %s275
      %s295 = sphi 0, %s297
      %s298 = sphi 0, %s295
      %s299 = sphi 0, %s298
      %s315 = sphi 0, %s299
    $region4: #{tpu_custom_call.1} parent=1 // loop_header_branch
      %26 = sbr.rel (%p24) target = $region8
    $region5: #{tpu_custom_call.1} parent=1 // loop_body
      %s28 = ssub.s32 %s23, 1
      %s29 = ssub.s32 %s23, 2
      %s30 = sadd.s32 %s23, 1
      %s31 = ssub.s32 %s23, %s30
      %p32 = scmp.eq.s32.totalorder %s31, 0
      %s34 = sadd.s32 %s33, 1
      %s35 = scalar_select %p32, %s33, %s34
      %p38 = pneg %p32
      %p39 = scmp.eq.s32.totalorder %s23, 1
      %p40 = por %p38, %p39
      %p41 = scmp.ne.s32.totalorder %s33, %s36
      %p42 = scmp.eq.s32.totalorder %s23, 0
      %p43 = por %p41, %p42
      %p44 = scmp.ne.s32.totalorder %s33, %s36
      %p45 = scmp.eq.s32.totalorder %s28, 1
      %p46 = por %p44, %p45
      %p47 = scmp.ne.s32.totalorder %s36, %s37
      %p48 = scmp.eq.s32.totalorder %s28, 0
      %p49 = por %p47, %p48
      %p50 = scmp.ne.s32.totalorder %s36, %s37
      %p51 = scmp.eq.s32.totalorder %s29, 1
      %p52 = por %p50, %p51
      %p54 = scmp.ne.s32.totalorder %s37, %s53
      %p55 = scmp.eq.s32.totalorder %s29, 0
      %p56 = por %p54, %p55
      %s57 = ssub.s32 %s23, %s30
      %p58 = scmp.eq.s32.totalorder %s57, 0
      %s60 = sadd.s32 %s59, 1
      %s61 = scalar_select %p58, %s59, %s60
      %p64 = pneg %p58
      %p65 = scmp.eq.s32.totalorder %s23, 1
      %p66 = por %p64, %p65
      %p67 = scmp.ne.s32.totalorder %s59, %s62
      %p68 = scmp.eq.s32.totalorder %s23, 0
      %p69 = por %p67, %p68
      %p70 = scmp.ne.s32.totalorder %s59, %s62
      %p71 = scmp.eq.s32.totalorder %s28, 1
      %p72 = por %p70, %p71
      %p73 = scmp.ne.s32.totalorder %s62, %s63
      %p74 = scmp.eq.s32.totalorder %s28, 0
      %p75 = por %p73, %p74
      %p76 = scmp.ne.s32.totalorder %s62, %s63
      %p77 = scmp.eq.s32.totalorder %s29, 1
      %p78 = por %p76, %p77
      %p80 = scmp.ne.s32.totalorder %s63, %s79
      %p81 = scmp.eq.s32.totalorder %s29, 0
      %p82 = por %p80, %p81
      %s84 = sadd.s32 %s83, 1
      %p87 = scmp.eq.s32.totalorder %s23, 1
      %p88 = scmp.ne.s32.totalorder %s83, %s85
      %p89 = scmp.eq.s32.totalorder %s23, 0
      %p90 = por %p88, %p89
      %p91 = scmp.ne.s32.totalorder %s83, %s85
      %p92 = scmp.eq.s32.totalorder %s28, 1
      %p93 = por %p91, %p92
      %p94 = scmp.ne.s32.totalorder %s85, %s86
      %p95 = scmp.eq.s32.totalorder %s28, 0
      %p96 = por %p94, %p95
      %p97 = scmp.ne.s32.totalorder %s85, %s86
      %p98 = scmp.eq.s32.totalorder %s29, 1
      %p99 = por %p97, %p98
      %p101 = scmp.ne.s32.totalorder %s86, %s100
      %p102 = scmp.eq.s32.totalorder %s29, 0
      %p103 = por %p101, %p102
      %s105 = sadd.s32 %s104, 1
      %p108 = scmp.eq.s32.totalorder %s23, 1
      %p109 = scmp.ne.s32.totalorder %s104, %s106
      %p110 = scmp.eq.s32.totalorder %s23, 0
      %p111 = por %p109, %p110
      %p112 = scmp.ne.s32.totalorder %s104, %s106
      %p113 = scmp.eq.s32.totalorder %s28, 1
      %p114 = por %p112, %p113
      %p115 = scmp.ne.s32.totalorder %s106, %s107
      %p116 = scmp.eq.s32.totalorder %s28, 0
      %p117 = por %p115, %p116
      %p118 = scmp.ne.s32.totalorder %s106, %s107
      %p119 = scmp.eq.s32.totalorder %s29, 1
      %p120 = por %p118, %p119
      %p122 = scmp.ne.s32.totalorder %s107, %s121
      %p123 = scmp.eq.s32.totalorder %s29, 0
      %p124 = por %p122, %p123
      %s126 = sadd.s32 %s125, 1
      %p129 = scmp.eq.s32.totalorder %s23, 1
      %p130 = scmp.ne.s32.totalorder %s125, %s127
      %p131 = scmp.eq.s32.totalorder %s23, 0
      %p132 = por %p130, %p131
      %p133 = scmp.ne.s32.totalorder %s125, %s127
      %p134 = scmp.eq.s32.totalorder %s28, 1
      %p135 = por %p133, %p134
      %p136 = scmp.ne.s32.totalorder %s127, %s128
      %p137 = scmp.eq.s32.totalorder %s28, 0
      %p138 = por %p136, %p137
      %p139 = scmp.ne.s32.totalorder %s127, %s128
      %p140 = scmp.eq.s32.totalorder %s29, 1
      %p141 = por %p139, %p140
      %p143 = scmp.ne.s32.totalorder %s128, %s142
      %p144 = scmp.eq.s32.totalorder %s29, 0
      %p145 = por %p143, %p144
      %s147 = sadd.s32 %s146, 1
      %p150 = scmp.eq.s32.totalorder %s23, 1
      %p151 = scmp.ne.s32.totalorder %s146, %s148
      %p152 = scmp.eq.s32.totalorder %s23, 0
      %p153 = por %p151, %p152
      %p154 = scmp.ne.s32.totalorder %s146, %s148
      %p155 = scmp.eq.s32.totalorder %s28, 1
      %p156 = por %p154, %p155
      %p157 = scmp.ne.s32.totalorder %s148, %s149
      %p158 = scmp.eq.s32.totalorder %s28, 0
      %p159 = por %p157, %p158
      %p160 = scmp.ne.s32.totalorder %s148, %s149
      %p161 = scmp.eq.s32.totalorder %s29, 1
      %p162 = por %p160, %p161
      %p164 = scmp.ne.s32.totalorder %s149, %s163
      %p165 = scmp.eq.s32.totalorder %s29, 0
      %p166 = por %p164, %p165
      %s168 = sadd.s32 %s167, 1
      %p171 = scmp.eq.s32.totalorder %s23, 1
      %p172 = scmp.ne.s32.totalorder %s167, %s169
      %p173 = scmp.eq.s32.totalorder %s23, 0
      %p174 = por %p172, %p173
      %p175 = scmp.ne.s32.totalorder %s167, %s169
      %p176 = scmp.eq.s32.totalorder %s28, 1
      %p177 = por %p175, %p176
      %p178 = scmp.ne.s32.totalorder %s169, %s170
      %p179 = scmp.eq.s32.totalorder %s28, 0
      %p180 = por %p178, %p179
      %p181 = scmp.ne.s32.totalorder %s169, %s170
      %p182 = scmp.eq.s32.totalorder %s29, 1
      %p183 = por %p181, %p182
      %p185 = scmp.ne.s32.totalorder %s170, %s184
      %p186 = scmp.eq.s32.totalorder %s29, 0
      %p187 = por %p185, %p186
      %s189 = sadd.s32 %s188, 1
      %p192 = scmp.eq.s32.totalorder %s23, 1
      %p193 = scmp.ne.s32.totalorder %s188, %s190
      %p194 = scmp.eq.s32.totalorder %s23, 0
      %p195 = por %p193, %p194
      %p196 = scmp.ne.s32.totalorder %s188, %s190
      %p197 = scmp.eq.s32.totalorder %s28, 1
      %p198 = por %p196, %p197
      %p199 = scmp.ne.s32.totalorder %s190, %s191
      %p200 = scmp.eq.s32.totalorder %s28, 0
      %p201 = por %p199, %p200
      %p202 = scmp.ne.s32.totalorder %s190, %s191
      %p203 = scmp.eq.s32.totalorder %s29, 1
      %p204 = por %p202, %p203
      %p206 = scmp.ne.s32.totalorder %s191, %s205
      %p207 = scmp.eq.s32.totalorder %s29, 0
      %p208 = por %p206, %p207
      %s210 = sadd.s32 %s209, 1
      %p213 = scmp.eq.s32.totalorder %s23, 1
      %p214 = scmp.ne.s32.totalorder %s209, %s211
      %p215 = scmp.eq.s32.totalorder %s23, 0
      %p216 = por %p214, %p215
      %p217 = scmp.ne.s32.totalorder %s209, %s211
      %p218 = scmp.eq.s32.totalorder %s28, 1
      %p219 = por %p217, %p218
      %p220 = scmp.ne.s32.totalorder %s211, %s212
      %p221 = scmp.eq.s32.totalorder %s28, 0
      %p222 = por %p220, %p221
      %p223 = scmp.ne.s32.totalorder %s211, %s212
      %p224 = scmp.eq.s32.totalorder %s29, 1
      %p225 = por %p223, %p224
      %p227 = scmp.ne.s32.totalorder %s212, %s226
      %p228 = scmp.eq.s32.totalorder %s29, 0
      %p229 = por %p227, %p228
      %s231 = sadd.s32 %s230, 1
      %p234 = scmp.eq.s32.totalorder %s23, 1
      %p235 = scmp.ne.s32.totalorder %s230, %s232
      %p236 = scmp.eq.s32.totalorder %s23, 0
      %p237 = por %p235, %p236
      %p238 = scmp.ne.s32.totalorder %s230, %s232
      %p239 = scmp.eq.s32.totalorder %s28, 1
      %p240 = por %p238, %p239
      %p241 = scmp.ne.s32.totalorder %s232, %s233
      %p242 = scmp.eq.s32.totalorder %s28, 0
      %p243 = por %p241, %p242
      %p244 = scmp.ne.s32.totalorder %s232, %s233
      %p245 = scmp.eq.s32.totalorder %s29, 1
      %p246 = por %p244, %p245
      %p248 = scmp.ne.s32.totalorder %s233, %s247
      %p249 = scmp.eq.s32.totalorder %s29, 0
      %p250 = por %p248, %p249
      %s252 = sadd.s32 %s251, 1
      %p255 = scmp.eq.s32.totalorder %s23, 1
      %p256 = scmp.ne.s32.totalorder %s251, %s253
      %p257 = scmp.eq.s32.totalorder %s23, 0
      %p258 = por %p256, %p257
      %p259 = scmp.ne.s32.totalorder %s251, %s253
      %p260 = scmp.eq.s32.totalorder %s28, 1
      %p261 = por %p259, %p260
      %p262 = scmp.ne.s32.totalorder %s253, %s254
      %p263 = scmp.eq.s32.totalorder %s28, 0
      %p264 = por %p262, %p263
      %p265 = scmp.ne.s32.totalorder %s253, %s254
      %p266 = scmp.eq.s32.totalorder %s29, 1
      %p267 = por %p265, %p266
      %p269 = scmp.ne.s32.totalorder %s254, %s268
      %p270 = scmp.eq.s32.totalorder %s29, 0
      %p271 = por %p269, %p270
      %s273 = sadd.s32 %s272, 1
      %p276 = scmp.eq.s32.totalorder %s23, 1
      %p277 = scmp.ne.s32.totalorder %s272, %s274
      %p278 = scmp.eq.s32.totalorder %s23, 0
      %p279 = por %p277, %p278
      %p280 = scmp.ne.s32.totalorder %s272, %s274
      %p281 = scmp.eq.s32.totalorder %s28, 1
      %p282 = por %p280, %p281
      %p283 = scmp.ne.s32.totalorder %s274, %s275
      %p284 = scmp.eq.s32.totalorder %s28, 0
      %p285 = por %p283, %p284
      %p286 = scmp.ne.s32.totalorder %s274, %s275
      %p287 = scmp.eq.s32.totalorder %s29, 1
      %p288 = por %p286, %p287
      %p290 = scmp.ne.s32.totalorder %s275, %s289
      %p291 = scmp.eq.s32.totalorder %s29, 0
      %p292 = por %p290, %p291
      %s293 = ssub.s32 %s23, %s30
      %p294 = scmp.eq.s32.totalorder %s293, 0
      %s296 = sadd.s32 %s295, 1
      %s297 = scalar_select %p294, %s295, %s296
      %p300 = pneg %p294
      %p301 = scmp.eq.s32.totalorder %s23, 1
      %p302 = por %p300, %p301
      %p303 = scmp.ne.s32.totalorder %s295, %s298
      %p304 = scmp.eq.s32.totalorder %s23, 0
      %p305 = por %p303, %p304
      %p306 = scmp.ne.s32.totalorder %s295, %s298
      %p307 = scmp.eq.s32.totalorder %s28, 1
      %p308 = por %p306, %p307
      %p309 = scmp.ne.s32.totalorder %s298, %s299
      %p310 = scmp.eq.s32.totalorder %s28, 0
      %p311 = por %p309, %p310
      %p312 = scmp.ne.s32.totalorder %s298, %s299
      %p313 = scmp.eq.s32.totalorder %s29, 1
      %p314 = por %p312, %p313
      %p316 = scmp.ne.s32.totalorder %s299, %s315
      %p317 = scmp.eq.s32.totalorder %s29, 0
      %p318 = por %p316, %p317
      %p319 = scmp.le.s32.totalorder 1, %s23
      %p320 = scmp.lt.s32.totalorder %s23, 3
      %p321 = pnand %p319, %p320
      %p322 = pneg %p321
      // Predicated region
      $region9: #{tpu_custom_call.1} parent=5 // pred_check
        _
      $region10: #{tpu_custom_call.1} parent=5 // pred_check_branch
        %324 = sbr.rel (%p321) target = $region12
      $region11: #{tpu_custom_call.1} parent=5 // pred_region
        %s325 = ssub.s32 %s23, 1
        // Predicated region
        $region13: #{tpu_custom_call.1} parent=11 // pred_check
          %p326 = pneg %p96
        $region14: #{tpu_custom_call.1} parent=11 // pred_check_branch
          %328 = sbr.rel (%p326) target = $region16
        $region15: #{tpu_custom_call.1} parent=11 // pred_region
          _
        $region16: #{tpu_custom_call.1} parent=11 // pred_fallthru
          _
        // Predicated region
        $region17: #{tpu_custom_call.1} parent=11 // pred_check
          %p329 = pneg %p117
        $region18: #{tpu_custom_call.1} parent=11 // pred_check_branch
          %331 = sbr.rel (%p329) target = $region20
        $region19: #{tpu_custom_call.1} parent=11 // pred_region
          _
        $region20: #{tpu_custom_call.1} parent=11 // pred_fallthru
          _
        // Predicated region
        $region21: #{tpu_custom_call.1} parent=11 // pred_check
          %p332 = pneg %p138
        $region22: #{tpu_custom_call.1} parent=11 // pred_check_branch
          %334 = sbr.rel (%p332) target = $region24
        $region23: #{tpu_custom_call.1} parent=11 // pred_region
          _
        $region24: #{tpu_custom_call.1} parent=11 // pred_fallthru
          _
        // Predicated region
        $region25: #{tpu_custom_call.1} parent=11 // pred_check
          %p335 = pneg %p159
        $region26: #{tpu_custom_call.1} parent=11 // pred_check_branch
          %337 = sbr.rel (%p335) target = $region28
        $region27: #{tpu_custom_call.1} parent=11 // pred_region
          _
        $region28: #{tpu_custom_call.1} parent=11 // pred_fallthru
          _
        // Predicated region
        $region29: #{tpu_custom_call.1} parent=11 // pred_check
          %p338 = pneg %p180
        $region30: #{tpu_custom_call.1} parent=11 // pred_check_branch
          %340 = sbr.rel (%p338) target = $region32
        $region31: #{tpu_custom_call.1} parent=11 // pred_region
          _
        $region32: #{tpu_custom_call.1} parent=11 // pred_fallthru
          _
        // Predicated region
        $region33: #{tpu_custom_call.1} parent=11 // pred_check
          %p341 = pneg %p201
        $region34: #{tpu_custom_call.1} parent=11 // pred_check_branch
          %343 = sbr.rel (%p341) target = $region36
        $region35: #{tpu_custom_call.1} parent=11 // pred_region
          _
        $region36: #{tpu_custom_call.1} parent=11 // pred_fallthru
          _
        // Predicated region
        $region37: #{tpu_custom_call.1} parent=11 // pred_check
          %p344 = pneg %p222
        $region38: #{tpu_custom_call.1} parent=11 // pred_check_branch
          %346 = sbr.rel (%p344) target = $region40
        $region39: #{tpu_custom_call.1} parent=11 // pred_region
          _
        $region40: #{tpu_custom_call.1} parent=11 // pred_fallthru
          _
        // Predicated region
        $region41: #{tpu_custom_call.1} parent=11 // pred_check
          %p347 = pneg %p243
        $region42: #{tpu_custom_call.1} parent=11 // pred_check_branch
          %349 = sbr.rel (%p347) target = $region44
        $region43: #{tpu_custom_call.1} parent=11 // pred_region
          _
        $region44: #{tpu_custom_call.1} parent=11 // pred_fallthru
          _
        // Predicated region
        $region45: #{tpu_custom_call.1} parent=11 // pred_check
          %p350 = pneg %p264
        $region46: #{tpu_custom_call.1} parent=11 // pred_check_branch
          %352 = sbr.rel (%p350) target = $region48
        $region47: #{tpu_custom_call.1} parent=11 // pred_region
          _
        $region48: #{tpu_custom_call.1} parent=11 // pred_fallthru
          _
        // Predicated region
        $region49: #{tpu_custom_call.1} parent=11 // pred_check
          %p353 = pneg %p285
        $region50: #{tpu_custom_call.1} parent=11 // pred_check_branch
          %355 = sbr.rel (%p353) target = $region52
        $region51: #{tpu_custom_call.1} parent=11 // pred_region
          _
        $region52: #{tpu_custom_call.1} parent=11 // pred_fallthru
          _
      $region12: #{tpu_custom_call.1} parent=5 // pred_fallthru
        _
      %p356 = scmp.lt.s32.totalorder %s23, 2
      // Predicated region
      $region53: #{tpu_custom_call.1} parent=5 // pred_check
        %p357 = pneg %p356
      $region54: #{tpu_custom_call.1} parent=5 // pred_check_branch
        %359 = sbr.rel (%p357) target = $region56
      $region55: #{tpu_custom_call.1} parent=5 // pred_region
        // Predicated region
        $region57: #{tpu_custom_call.1} parent=55 // pred_check
          %p360 = pneg %p43
        $region58: #{tpu_custom_call.1} parent=55 // pred_check_branch
          %362 = sbr.rel (%p360) target = $region60
        $region59: #{tpu_custom_call.1} parent=55 // pred_region
          %s363 = sand.u32 %s33, 1
          %s364 = sand.u32 %s33, 1
          %s365 = smul.addr %s364, 32
          %s366 = scalar_lea.vmem [#allocation3], %s365
          %s367 = smul.u32 2, %s23
          %s368 = smul.addr %s367, 4
          %s369 = scalar_lea.vmem %s0, %s368
          // Predicated region
          $region61: #{tpu_custom_call.1} parent=59 // pred_check
            _
          $region62: #{tpu_custom_call.1} parent=59 // pred_check_branch
            %371 = sbr.rel (0) target = $region64
          $region63: #{tpu_custom_call.1} parent=59 // pred_region
            // Predicated region
            $region65: #{tpu_custom_call.1} parent=63 // pred_check
              _
            $region66: #{tpu_custom_call.1} parent=63 // pred_check_branch
              %373 = sbr.rel (0) target = $region68
            $region67: #{tpu_custom_call.1} parent=63 // pred_region
              // Predicated region
              $region80: #{tpu_custom_call.1} parent=67 // pred_check
                _
              $region81: #{tpu_custom_call.1} parent=67 // pred_check_branch
                %394 = sbr.rel (0) target = $region83
              $region82: #{tpu_custom_call.1} parent=67 // pred_region
                loop: start=0, step=1, limit=1
                $region84: #{tpu_custom_call.1} parent=82 // loop_pre_header
                  _
                $region85: #{tpu_custom_call.1} parent=82 // loop_header
                  %s396 = sphi 0, %s400
                  %p397 = scmp.ge.s32.totalorder %s396, 1
                  %s401 = sphi %s369, %s369
                  %s402 = sphi %s366, %s366
                $region86: #{tpu_custom_call.1} parent=82 // loop_header_branch
                  %399 = sbr.rel (%p397) target = $region90
                $region87: #{tpu_custom_call.1} parent=82 // loop_body
                  %v403 = vld [vmem:[%s401] sm:$0xff]
                  %404 = vst [vmem:[%s402] sm:$0xff] %v403
                  %v405 = vld [vmem:[%s401 + $0x10] sm:$0xff]
                  %406 = vst [vmem:[%s402 + $0x8] sm:$0xff] %v405
                  %v407 = vld [vmem:[%s401 + $0x20] sm:$0xff]
                  %408 = vst [vmem:[%s402 + $0x10] sm:$0xff] %v407
                  %v409 = vld [vmem:[%s401 + $0x30] sm:$0xff]
                  %410 = vst [vmem:[%s402 + $0x18] sm:$0xff] %v409
                $region88: #{tpu_custom_call.1} parent=82 // loop_footer
                  %s400 = sadd.s32 1, %s396
                $region89: #{tpu_custom_call.1} parent=82 // loop_footer_branch
                  %395 = sbr.rel target = $region85
                $region90: #{tpu_custom_call.1} parent=82 // loop_exit
                  _
              $region83: #{tpu_custom_call.1} parent=67 // pred_fallthru
                _
              // Predicated region
              $region91: #{tpu_custom_call.1} parent=67 // pred_check
                _
              $region92: #{tpu_custom_call.1} parent=67 // pred_check_branch
                %412 = sbr.rel target = $region94
              $region93: #{tpu_custom_call.1} parent=67 // pred_region
                _
              $region94: #{tpu_custom_call.1} parent=67 // pred_fallthru
                _
            $region68: #{tpu_custom_call.1} parent=63 // pred_fallthru
              _
            // Predicated region
            $region69: #{tpu_custom_call.1} parent=63 // pred_check
              _
            $region70: #{tpu_custom_call.1} parent=63 // pred_check_branch
              %375 = sbr.rel target = $region72
            $region71: #{tpu_custom_call.1} parent=63 // pred_region
              loop: start=0, step=1, limit=1
              $region73: #{tpu_custom_call.1} parent=71 // loop_pre_header
                _
              $region74: #{tpu_custom_call.1} parent=71 // loop_header
                %s378 = sphi 0, %s382
                %p379 = scmp.ge.s32.totalorder %s378, 1
                %s383 = sphi %s369, %s369
                %s384 = sphi %s366, %s366
              $region75: #{tpu_custom_call.1} parent=71 // loop_header_branch
                %381 = sbr.rel (%p379) target = $region79
              $region76: #{tpu_custom_call.1} parent=71 // loop_body
                %v385 = vld [vmem:[%s383] sm:$0xff]
                %386 = vst [vmem:[%s384] sm:$0xff] %v385
                %v387 = vld [vmem:[%s383 + $0x10] sm:$0xff]
                %388 = vst [vmem:[%s384 + $0x8] sm:$0xff] %v387
                %v389 = vld [vmem:[%s383 + $0x20] sm:$0xff]
                %390 = vst [vmem:[%s384 + $0x10] sm:$0xff] %v389
                %v391 = vld [vmem:[%s383 + $0x30] sm:$0xff]
                %392 = vst [vmem:[%s384 + $0x18] sm:$0xff] %v391
              $region77: #{tpu_custom_call.1} parent=71 // loop_footer
                %s382 = sadd.s32 1, %s378
              $region78: #{tpu_custom_call.1} parent=71 // loop_footer_branch
                %377 = sbr.rel target = $region74
              $region79: #{tpu_custom_call.1} parent=71 // loop_exit
                _
            $region72: #{tpu_custom_call.1} parent=63 // pred_fallthru
              _
          $region64: #{tpu_custom_call.1} parent=59 // pred_fallthru
            _
          %413 = vnop
        $region60: #{tpu_custom_call.1} parent=55 // pred_fallthru
          _
        // Predicated region
        $region95: #{tpu_custom_call.1} parent=55 // pred_check
          %p414 = pneg %p69
        $region96: #{tpu_custom_call.1} parent=55 // pred_check_branch
          %416 = sbr.rel (%p414) target = $region98
        $region97: #{tpu_custom_call.1} parent=55 // pred_region
          %s417 = sand.u32 %s59, 1
          %s418 = sand.u32 %s59, 1
          %s419 = smul.addr %s418, 32
          %s420 = scalar_lea.vmem [#allocation4], %s419
          %s421 = smul.u32 2, %s23
          %s422 = smul.addr %s421, 4
          %s423 = scalar_lea.vmem %s1, %s422
          // Predicated region
          $region99: #{tpu_custom_call.1} parent=97 // pred_check
            _
          $region100: #{tpu_custom_call.1} parent=97 // pred_check_branch
            %425 = sbr.rel (0) target = $region102
          $region101: #{tpu_custom_call.1} parent=97 // pred_region
            // Predicated region
            $region103: #{tpu_custom_call.1} parent=101 // pred_check
              _
            $region104: #{tpu_custom_call.1} parent=101 // pred_check_branch
              %427 = sbr.rel (0) target = $region106
            $region105: #{tpu_custom_call.1} parent=101 // pred_region
              // Predicated region
              $region118: #{tpu_custom_call.1} parent=105 // pred_check
                _
              $region119: #{tpu_custom_call.1} parent=105 // pred_check_branch
                %448 = sbr.rel (0) target = $region121
              $region120: #{tpu_custom_call.1} parent=105 // pred_region
                loop: start=0, step=1, limit=1
                $region122: #{tpu_custom_call.1} parent=120 // loop_pre_header
                  _
                $region123: #{tpu_custom_call.1} parent=120 // loop_header
                  %s450 = sphi 0, %s454
                  %p451 = scmp.ge.s32.totalorder %s450, 1
                  %s455 = sphi %s423, %s423
                  %s456 = sphi %s420, %s420
                $region124: #{tpu_custom_call.1} parent=120 // loop_header_branch
                  %453 = sbr.rel (%p451) target = $region128
                $region125: #{tpu_custom_call.1} parent=120 // loop_body
                  %v457 = vld [vmem:[%s455] sm:$0xff]
                  %458 = vst [vmem:[%s456] sm:$0xff] %v457
                  %v459 = vld [vmem:[%s455 + $0x10] sm:$0xff]
                  %460 = vst [vmem:[%s456 + $0x8] sm:$0xff] %v459
                  %v461 = vld [vmem:[%s455 + $0x20] sm:$0xff]
                  %462 = vst [vmem:[%s456 + $0x10] sm:$0xff] %v461
                  %v463 = vld [vmem:[%s455 + $0x30] sm:$0xff]
                  %464 = vst [vmem:[%s456 + $0x18] sm:$0xff] %v463
                $region126: #{tpu_custom_call.1} parent=120 // loop_footer
                  %s454 = sadd.s32 1, %s450
                $region127: #{tpu_custom_call.1} parent=120 // loop_footer_branch
                  %449 = sbr.rel target = $region123
                $region128: #{tpu_custom_call.1} parent=120 // loop_exit
                  _
              $region121: #{tpu_custom_call.1} parent=105 // pred_fallthru
                _
              // Predicated region
              $region129: #{tpu_custom_call.1} parent=105 // pred_check
                _
              $region130: #{tpu_custom_call.1} parent=105 // pred_check_branch
                %466 = sbr.rel target = $region132
              $region131: #{tpu_custom_call.1} parent=105 // pred_region
                _
              $region132: #{tpu_custom_call.1} parent=105 // pred_fallthru
                _
            $region106: #{tpu_custom_call.1} parent=101 // pred_fallthru
              _
            // Predicated region
            $region107: #{tpu_custom_call.1} parent=101 // pred_check
              _
            $region108: #{tpu_custom_call.1} parent=101 // pred_check_branch
              %429 = sbr.rel target = $region110
            $region109: #{tpu_custom_call.1} parent=101 // pred_region
              loop: start=0, step=1, limit=1
              $region111: #{tpu_custom_call.1} parent=109 // loop_pre_header
                _
              $region112: #{tpu_custom_call.1} parent=109 // loop_header
                %s432 = sphi 0, %s436
                %p433 = scmp.ge.s32.totalorder %s432, 1
                %s437 = sphi %s423, %s423
                %s438 = sphi %s420, %s420
              $region113: #{tpu_custom_call.1} parent=109 // loop_header_branch
                %435 = sbr.rel (%p433) target = $region117
              $region114: #{tpu_custom_call.1} parent=109 // loop_body
                %v439 = vld [vmem:[%s437] sm:$0xff]
                %440 = vst [vmem:[%s438] sm:$0xff] %v439
                %v441 = vld [vmem:[%s437 + $0x10] sm:$0xff]
                %442 = vst [vmem:[%s438 + $0x8] sm:$0xff] %v441
                %v443 = vld [vmem:[%s437 + $0x20] sm:$0xff]
                %444 = vst [vmem:[%s438 + $0x10] sm:$0xff] %v443
                %v445 = vld [vmem:[%s437 + $0x30] sm:$0xff]
                %446 = vst [vmem:[%s438 + $0x18] sm:$0xff] %v445
              $region115: #{tpu_custom_call.1} parent=109 // loop_footer
                %s436 = sadd.s32 1, %s432
              $region116: #{tpu_custom_call.1} parent=109 // loop_footer_branch
                %431 = sbr.rel target = $region112
              $region117: #{tpu_custom_call.1} parent=109 // loop_exit
                _
            $region110: #{tpu_custom_call.1} parent=101 // pred_fallthru
              _
          $region102: #{tpu_custom_call.1} parent=97 // pred_fallthru
            _
          %467 = vnop
        $region98: #{tpu_custom_call.1} parent=55 // pred_fallthru
          _
      $region56: #{tpu_custom_call.1} parent=5 // pred_fallthru
        _
      %p468 = scmp.le.s32.totalorder 1, %s23
      %p469 = scmp.lt.s32.totalorder %s23, 3
      %p470 = pnand %p468, %p469
      %p471 = pneg %p470
      // Predicated region
      $region133: #{tpu_custom_call.1} parent=5 // pred_check
        _
      $region134: #{tpu_custom_call.1} parent=5 // pred_check_branch
        %473 = sbr.rel (%p470) target = $region136
      $region135: #{tpu_custom_call.1} parent=5 // pred_region
        %s474 = ssub.s32 %s23, 1
        %s475 = sand.u32 %s36, 1
        %s476 = sand.u32 %s36, 1
        %s477 = smul.addr %s476, 32
        %s478 = scalar_lea.vmem [#allocation3], %s477
        // Predicated region
        $region137: #{tpu_custom_call.1} parent=135 // pred_check
          %p479 = pneg %p49
        $region138: #{tpu_custom_call.1} parent=135 // pred_check_branch
          %481 = sbr.rel (%p479) target = $region140
        $region139: #{tpu_custom_call.1} parent=135 // pred_region
          _
        $region140: #{tpu_custom_call.1} parent=135 // pred_fallthru
          _
        %s482 = sand.u32 %s62, 1
        %s483 = sand.u32 %s62, 1
        %s484 = smul.addr %s483, 32
        %s485 = scalar_lea.vmem [#allocation4], %s484
        // Predicated region
        $region141: #{tpu_custom_call.1} parent=135 // pred_check
          %p486 = pneg %p75
        $region142: #{tpu_custom_call.1} parent=135 // pred_check_branch
          %488 = sbr.rel (%p486) target = $region144
        $region143: #{tpu_custom_call.1} parent=135 // pred_region
          _
        $region144: #{tpu_custom_call.1} parent=135 // pred_fallthru
          _
        %s489 = sand.u32 %s36, 1
        %s490 = sand.u32 %s36, 1
        %s491 = smul.addr %s490, 32
        %s492 = scalar_lea.vmem [#allocation3], %s491
        %p493 = pneg %p49
        %p494 = pneg %p46
        %s495 = sand.u32 %s62, 1
        %s496 = sand.u32 %s62, 1
        %s497 = smul.addr %s496, 32
        %s498 = scalar_lea.vmem [#allocation4], %s497
        %p499 = pneg %p75
        %p500 = pneg %p72
        %p501 = pneg %p96
        %p502 = pneg %p93
        %p503 = pneg %p117
        %p504 = pneg %p114
        %p505 = pneg %p138
        %p506 = pneg %p135
        %p507 = pneg %p159
        %p508 = pneg %p156
        %p509 = pneg %p180
        %p510 = pneg %p177
        %p511 = pneg %p201
        %p512 = pneg %p198
        %p513 = pneg %p222
        %p514 = pneg %p219
        %p515 = pneg %p243
        %p516 = pneg %p240
        %p517 = pneg %p264
        %p518 = pneg %p261
        %p519 = pneg %p285
        %p520 = pneg %p282
        %p521 = pneg %p311
        %p522 = pneg %p308
        %s523 = sand.u32 %s298, 1
        %s524 = scalar_lea.sflag [#allocation6], %s523
        %s525 = sand.u32 %s298, 1
        %s526 = smul.addr %s525, 2
        %s527 = scalar_lea.vmem [#allocation5], %s526
        %s528 = smul.u32 2, %s28
        %s529 = smul.u32 2, %s28
        %s530 = smul.u32 2, %s28
        %v532 = vld [vmem:[%s478] sm:$0xff]
        %v533 = vld [vmem:[%s478 + $0x8] sm:$0xff]
        %v534 = vld [vmem:[%s478 + $0x10] sm:$0xff]
        %v535 = vld [vmem:[%s478 + $0x18] sm:$0xff]
        %v536 = vld [vmem:[%s485] sm:$0xff]
        %v537 = vld [vmem:[%s485 + $0x8] sm:$0xff]
        %v538 = vld [vmem:[%s485 + $0x10] sm:$0xff]
        %v539 = vld [vmem:[%s485 + $0x18] sm:$0xff]
        %v540 = vunpack.c.l.bf16 %v532
        %v541 = vunpack.c.h.bf16 %v532
        %v542 = vunpack.c.l.bf16 %v533
        %v543 = vunpack.c.h.bf16 %v533
        %v544 = vunpack.c.l.bf16 %v538
        %v545 = vunpack.c.h.bf16 %v538
        %v546 = vunpack.c.l.bf16 %v539
        %v547 = vunpack.c.h.bf16 %v539
        %v548 = vmul.f32 %v540, %v544
        %v549 = vmul.f32 %v541, %v545
        %v550 = vmul.f32 %v542, %v546
        %v551 = vmul.f32 %v543, %v547
        %v552 = vld [vmem:[%s2] sm:$0xf]
        %v553 = vld [vmem:[%s2 + $0x4] sm:$0xf]
        %v554 = vld [vmem:[%s2 + $0x8] sm:$0xf]
        %v555 = vld [vmem:[%s2 + $0xc] sm:$0xf]
        %v556 = vld [vmem:[%s3] sm:$0xf]
        %v557 = vld [vmem:[%s3 + $0x4] sm:$0xf]
        %v558 = vld [vmem:[%s3 + $0x8] sm:$0xf]
        %v559 = vld [vmem:[%s3 + $0xc] sm:$0xf]
        %v564 = vunpack.c.l.b16 %v556
        %v565 = vunpack.c.l.b16 %v557
        %v566 = vunpack.c.l.b16 %v558
        %v567 = vunpack.c.l.b16 %v559
        %v568 = vpack.c.b16 %v565, %v564
        %v569 = vpack.c.b16 %v567, %v566
        %v572 = vunpack.c.l.b16 %v536
        %v573 = vunpack.c.h.b16 %v536
        %v574 = vunpack.c.l.b16 %v537
        %v575 = vunpack.c.h.b16 %v537
        %v576 = vpack.c.b16 %v574, %v572
        %v577 = vpack.c.b16 %v575, %v573
        %vm580 = vcmask 130048
        %v582 = vsel %vm580, %v568, 0
        %v585 = vsel %vm580, %v569, 0
        %587 = vmatprep.subr.bf16.mxu0 %v577
        %588 = vmatpush1.bf16.msra.mxu0 %v576
        %589 = vmatprep.subr.bf16.mxu0 0
        %590 = vmatpush1.bf16.msra.mxu0 0
        %591 = vmatprep.subr.bf16.mxu0 0
        %592 = vmatpush1.bf16.msra.mxu0 0
        %593 = vmatprep.subr.bf16.mxu0 0
        %594 = vmatpush1.bf16.msra.mxu0 0
        %595 = vmatprep.subr.bf16.mxu0 0
        %596 = vmatpush1.bf16.msra.mxu0 0
        %597 = vmatprep.subr.bf16.mxu0 0
        %598 = vmatpush1.bf16.msra.mxu0 0
        %599 = vmatprep.subr.bf16.mxu0 0
        %600 = vmatpush1.bf16.msra.mxu0 0
        %601 = vmatprep.subr.bf16.mxu0 0
        %602 = vmatpush1.bf16.msra.mxu0 0
        %603 = vmatprep.subr.bf16.mxu0 0
        %604 = vmatpush1.bf16.msra.mxu0 0
        %605 = vmatprep.subr.bf16.mxu0 0
        %606 = vmatpush1.bf16.msra.mxu0 0
        %607 = vmatprep.subr.bf16.mxu0 0
        %608 = vmatpush1.bf16.msra.mxu0 0
        %609 = vmatprep.subr.bf16.mxu0 0
        %610 = vmatpush1.bf16.msra.mxu0 0
        %611 = vmatprep.subr.bf16.mxu0 0
        %612 = vmatpush1.bf16.msra.mxu0 0
        %613 = vmatprep.subr.bf16.mxu0 0
        %614 = vmatpush1.bf16.msra.mxu0 0
        %615 = vmatprep.subr.bf16.mxu0 0
        %616 = vmatpush1.bf16.msra.mxu0 0
        %617 = vmatprep.subr.bf16.mxu0 0
        %618 = vmatpush1.bf16.msra.mxu0 0
        %619 = vmatprep.mubr.bf16.mxu0 0
        %620 = vmatmul.mubr.bf16.gmra.mrb[0].mxu0 %v582
        %v621 = vpop.f32.mrb[0].mxu0
        %v622 = vadd.f32 0.0, %v621
        %v623 = vpop.f32.mrb[0].mxu0
        %v624 = vadd.f32 0.0, %v623
        %v625 = vpop.f32.mrb[0].mxu0
        %v626 = vadd.f32 0.0, %v625
        %v627 = vpop.f32.mrb[0].mxu0
        %v628 = vadd.f32 0.0, %v627
        %629 = vmatprep.mubr.bf16.mxu0 0
        %630 = vmatmul.mubr.bf16.gmra.mrb[0].mxu0 %v585
        %v631 = vpop.f32.mrb[0].mxu0
        %v632 = vadd.f32 0.0, %v631
        %v633 = vpop.f32.mrb[0].mxu0
        %v634 = vadd.f32 0.0, %v633
        %v635 = vpop.f32.mrb[0].mxu0
        %v636 = vadd.f32 0.0, %v635
        %v637 = vpop.f32.mrb[0].mxu0
        %v638 = vadd.f32 0.0, %v637
        %639 = vdwg.mxu0
        %v644 = vunpack.c.l.b16 %v552
        %v645 = vunpack.c.l.b16 %v553
        %v646 = vunpack.c.l.b16 %v554
        %v647 = vunpack.c.l.b16 %v555
        %v648 = vpack.c.b16 %v645, %v644
        %v649 = vpack.c.b16 %v647, %v646
        %v652 = vunpack.c.l.b16 %v534
        %v653 = vunpack.c.h.b16 %v534
        %v654 = vunpack.c.l.b16 %v535
        %v655 = vunpack.c.h.b16 %v535
        %v656 = vpack.c.b16 %v654, %v652
        %v657 = vpack.c.b16 %v655, %v653
        %v661 = vsel %vm580, %v648, 0
        %v664 = vsel %vm580, %v649, 0
        %666 = vmatprep.subr.bf16.mxu0 %v657
        %667 = vmatpush1.bf16.msra.mxu0 %v656
        %668 = vmatprep.subr.bf16.mxu0 0
        %669 = vmatpush1.bf16.msra.mxu0 0
        %670 = vmatprep.subr.bf16.mxu0 0
        %671 = vmatpush1.bf16.msra.mxu0 0
        %672 = vmatprep.subr.bf16.mxu0 0
        %673 = vmatpush1.bf16.msra.mxu0 0
        %674 = vmatprep.subr.bf16.mxu0 0
        %675 = vmatpush1.bf16.msra.mxu0 0
        %676 = vmatprep.subr.bf16.mxu0 0
        %677 = vmatpush1.bf16.msra.mxu0 0
        %678 = vmatprep.subr.bf16.mxu0 0
        %679 = vmatpush1.bf16.msra.mxu0 0
        %680 = vmatprep.subr.bf16.mxu0 0
        %681 = vmatpush1.bf16.msra.mxu0 0
        %682 = vmatprep.subr.bf16.mxu0 0
        %683 = vmatpush1.bf16.msra.mxu0 0
        %684 = vmatprep.subr.bf16.mxu0 0
        %685 = vmatpush1.bf16.msra.mxu0 0
        %686 = vmatprep.subr.bf16.mxu0 0
        %687 = vmatpush1.bf16.msra.mxu0 0
        %688 = vmatprep.subr.bf16.mxu0 0
        %689 = vmatpush1.bf16.msra.mxu0 0
        %690 = vmatprep.subr.bf16.mxu0 0
        %691 = vmatpush1.bf16.msra.mxu0 0
        %692 = vmatprep.subr.bf16.mxu0 0
        %693 = vmatpush1.bf16.msra.mxu0 0
        %694 = vmatprep.subr.bf16.mxu0 0
        %695 = vmatpush1.bf16.msra.mxu0 0
        %696 = vmatprep.subr.bf16.mxu0 0
        %697 = vmatpush1.bf16.msra.mxu0 0
        %698 = vmatprep.mubr.bf16.mxu0 0
        %699 = vmatmul.mubr.bf16.gmra.mrb[0].mxu0 %v661
        %v700 = vpop.f32.mrb[0].mxu0
        %v701 = vadd.f32 %v622, %v700
        %v702 = vpop.f32.mrb[0].mxu0
        %v703 = vadd.f32 %v624, %v702
        %v704 = vpop.f32.mrb[0].mxu0
        %v705 = vadd.f32 %v626, %v704
        %v706 = vpop.f32.mrb[0].mxu0
        %v707 = vadd.f32 %v628, %v706
        %708 = vmatprep.mubr.bf16.mxu0 0
        %709 = vmatmul.mubr.bf16.gmra.mrb[0].mxu0 %v664
        %v710 = vpop.f32.mrb[0].mxu0
        %v711 = vadd.f32 %v632, %v710
        %v712 = vpop.f32.mrb[0].mxu0
        %v713 = vadd.f32 %v634, %v712
        %v714 = vpop.f32.mrb[0].mxu0
        %v715 = vadd.f32 %v636, %v714
        %v716 = vpop.f32.mrb[0].mxu0
        %v717 = vadd.f32 %v638, %v716
        %718 = vdwg.mxu0
        %v719 = vld [vmem:[%s4] sm:$0xff]
        %v720 = vld [vmem:[%s4 + $0x8] sm:$0xff]
        %v721 = vld [vmem:[%s4 + $0x10] sm:$0xff]
        %v722 = vld [vmem:[%s4 + $0x18] sm:$0xff]
        %724 = vset.pattern.permute.xlu0 0
        %725 = vperm.xlu0 %724, %v719
        %v726 = vpop.permute.xlu0 %725
        %729 = vset.pattern.permute.xlu0 0
        %730 = vperm.xlu0 %729, %v720
        %v731 = vpop.permute.xlu0 %730
        %734 = vset.pattern.permute.xlu0 0
        %735 = vperm.xlu0 %734, %v721
        %v736 = vpop.permute.xlu0 %735
        %739 = vset.pattern.permute.xlu0 0
        %740 = vperm.xlu0 %739, %v722
        %v741 = vpop.permute.xlu0 %740
        %v743 = vadd.f32 %v701, %v726
        %v744 = vadd.f32 %v703, %v726
        %v745 = vadd.f32 %v705, %v731
        %v746 = vadd.f32 %v707, %v731
        %v747 = vadd.f32 %v711, %v736
        %v748 = vadd.f32 %v713, %v736
        %v749 = vadd.f32 %v715, %v741
        %v750 = vadd.f32 %v717, %v741
        %v751 = vmax.f32 %v743, 0.0
        %v752 = vmax.f32 %v744, 0.0
        %v753 = vmax.f32 %v745, 0.0
        %v754 = vmax.f32 %v746, 0.0
        %v755 = vmax.f32 %v747, 0.0
        %v756 = vmax.f32 %v748, 0.0
        %v757 = vmax.f32 %v749, 0.0
        %v758 = vmax.f32 %v750, 0.0
        %v759 = vld [vmem:[%s5] sm:$0xf]
        %v760 = vld [vmem:[%s5 + $0x4] sm:$0xf]
        %v761 = vpack.c.bf16 %v753, %v751
        %v762 = vpack.c.bf16 %v754, %v752
        %v763 = vpack.c.bf16 %v757, %v755
        %v764 = vpack.c.bf16 %v758, %v756
        %v765 = vld [vmem:[%s6] sm:$0xff]
        %v766 = vld [vmem:[%s6 + $0x8] sm:$0xff]
        %768 = vset.pattern.permute.xlu0 0
        %769 = vperm.xlu0 %768, %v765
        %v770 = vpop.permute.xlu0 %769
        %773 = vset.pattern.permute.xlu0 0
        %774 = vperm.xlu0 %773, %v766
        %v775 = vpop.permute.xlu0 %774
        %v779 = vunpack.c.l.b16 %v759
        %v780 = vunpack.c.l.b16 %v760
        %v781 = vpack.c.b16 %v780, %v779
        %vm782 = vcmask 261120
        %v784 = vsel %vm782, %v781, 0
        %786 = vmatprep.subr.bf16.mxu0 %v762
        %787 = vmatpush1.bf16.msra.mxu0 %v761
        %788 = vmatprep.subr.bf16.mxu0 %v764
        %789 = vmatpush1.bf16.msra.mxu0 %v763
        %790 = vmatprep.subr.bf16.mxu0 0
        %791 = vmatpush1.bf16.msra.mxu0 0
        %792 = vmatprep.subr.bf16.mxu0 0
        %793 = vmatpush1.bf16.msra.mxu0 0
        %794 = vmatprep.subr.bf16.mxu0 0
        %795 = vmatpush1.bf16.msra.mxu0 0
        %796 = vmatprep.subr.bf16.mxu0 0
        %797 = vmatpush1.bf16.msra.mxu0 0
        %798 = vmatprep.subr.bf16.mxu0 0
        %799 = vmatpush1.bf16.msra.mxu0 0
        %800 = vmatprep.subr.bf16.mxu0 0
        %801 = vmatpush1.bf16.msra.mxu0 0
        %802 = vmatprep.subr.bf16.mxu0 0
        %803 = vmatpush1.bf16.msra.mxu0 0
        %804 = vmatprep.subr.bf16.mxu0 0
        %805 = vmatpush1.bf16.msra.mxu0 0
        %806 = vmatprep.subr.bf16.mxu0 0
        %807 = vmatpush1.bf16.msra.mxu0 0
        %808 = vmatprep.subr.bf16.mxu0 0
        %809 = vmatpush1.bf16.msra.mxu0 0
        %810 = vmatprep.subr.bf16.mxu0 0
        %811 = vmatpush1.bf16.msra.mxu0 0
        %812 = vmatprep.subr.bf16.mxu0 0
        %813 = vmatpush1.bf16.msra.mxu0 0
        %814 = vmatprep.subr.bf16.mxu0 0
        %815 = vmatpush1.bf16.msra.mxu0 0
        %816 = vmatprep.subr.bf16.mxu0 0
        %817 = vmatpush1.bf16.msra.mxu0 0
        %818 = vmatprep.mubr.bf16.mxu0 0
        %819 = vmatmul.mubr.bf16.gmra.mrb[0].mxu0 %v784
        %v820 = vpop.f32.mrb[0].mxu0
        %v821 = vadd.f32 %v770, %v820
        %v822 = vpop.f32.mrb[0].mxu0
        %v823 = vadd.f32 %v770, %v822
        %v824 = vpop.f32.mrb[0].mxu0
        %v825 = vadd.f32 %v775, %v824
        %v826 = vpop.f32.mrb[0].mxu0
        %v827 = vadd.f32 %v775, %v826
        %828 = vdwg.mxu0
        %v829 = vmax.f32 %v821, 0.0
        %v830 = vmax.f32 %v823, 0.0
        %v831 = vmax.f32 %v825, 0.0
        %v832 = vmax.f32 %v827, 0.0
        %v833 = vld [vmem:[%s7] sm:$0xf]
        %v834 = vpack.c.bf16 %v831, %v829
        %v835 = vpack.c.bf16 %v832, %v830
        %v836 = vld [vmem:[%s8] sm:$0xff]
        %838 = vset.pattern.permute.xlu0 0
        %839 = vperm.xlu0 %838, %v836
        %v840 = vpop.permute.xlu0 %839
        %v843 = vsel %vm580, %v833, 0
        %845 = vmatprep.subr.bf16.mxu0 %v835
        %846 = vmatpush1.bf16.msra.mxu0 %v834
        %847 = vmatprep.subr.bf16.mxu0 0
        %848 = vmatpush1.bf16.msra.mxu0 0
        %849 = vmatprep.subr.bf16.mxu0 0
        %850 = vmatpush1.bf16.msra.mxu0 0
        %851 = vmatprep.subr.bf16.mxu0 0
        %852 = vmatpush1.bf16.msra.mxu0 0
        %853 = vmatprep.subr.bf16.mxu0 0
        %854 = vmatpush1.bf16.msra.mxu0 0
        %855 = vmatprep.subr.bf16.mxu0 0
        %856 = vmatpush1.bf16.msra.mxu0 0
        %857 = vmatprep.subr.bf16.mxu0 0
        %858 = vmatpush1.bf16.msra.mxu0 0
        %859 = vmatprep.subr.bf16.mxu0 0
        %860 = vmatpush1.bf16.msra.mxu0 0
        %861 = vmatprep.subr.bf16.mxu0 0
        %862 = vmatpush1.bf16.msra.mxu0 0
        %863 = vmatprep.subr.bf16.mxu0 0
        %864 = vmatpush1.bf16.msra.mxu0 0
        %865 = vmatprep.subr.bf16.mxu0 0
        %866 = vmatpush1.bf16.msra.mxu0 0
        %867 = vmatprep.subr.bf16.mxu0 0
        %868 = vmatpush1.bf16.msra.mxu0 0
        %869 = vmatprep.subr.bf16.mxu0 0
        %870 = vmatpush1.bf16.msra.mxu0 0
        %871 = vmatprep.subr.bf16.mxu0 0
        %872 = vmatpush1.bf16.msra.mxu0 0
        %873 = vmatprep.subr.bf16.mxu0 0
        %874 = vmatpush1.bf16.msra.mxu0 0
        %875 = vmatprep.subr.bf16.mxu0 0
        %876 = vmatpush1.bf16.msra.mxu0 0
        %877 = vmatprep.mubr.bf16.mxu0 0
        %878 = vmatmul.mubr.bf16.gmra.mrb[0].mxu0 %v843
        %v879 = vpop.f32.mrb[0].mxu0
        %v880 = vadd.f32 %v840, %v879
        %v881 = vpop.f32.mrb[0].mxu0
        %v882 = vadd.f32 %v840, %v881
        %v883 = vpop.f32.mrb[0].mxu0
        %v884 = vpop.f32.mrb[0].mxu0
        %885 = vdwg.mxu0
        %v886 = vmax.f32 %v880, 0.0
        %v887 = vmax.f32 %v882, 0.0
        %v888 = vld [vmem:[%s9] sm:$0xff]
        %v889 = vld [vmem:[%s9 + $0x8] sm:$0xff]
        %891 = vset.pattern.permute.xlu0 0
        %892 = vperm.xlu0 %891, %v888
        %v893 = vpop.permute.xlu0 %892
        %896 = vset.pattern.permute.xlu0 0
        %897 = vperm.xlu0 %896, %v889
        %v898 = vpop.permute.xlu0 %897
        %v900 = vmul.f32 %v893, %v548
        %v901 = vmul.f32 %v893, %v549
        %v902 = vmul.f32 %v898, %v550
        %v903 = vmul.f32 %v898, %v551
        %v904 = vadd.f32 %v900, %v902
        %v905 = vrot.slane %v904, 4
        %v906 = vadd.f32 %v904, %v905
        %v907 = vrot.slane %v906, 2
        %v908 = vadd.f32 %v906, %v907
        %v909 = vrot.slane %v908, 1
        %v910 = vadd.f32 %v908, %v909
        %v911 = vadd.f32 %v901, %v903
        %v912 = vrot.slane %v911, 4
        %v913 = vadd.f32 %v911, %v912
        %v914 = vrot.slane %v913, 2
        %v915 = vadd.f32 %v913, %v914
        %v916 = vrot.slane %v915, 1
        %v917 = vadd.f32 %v915, %v916
        %v918 = vld [vmem:[%s10] sm:$0xff]
        %920 = vset.pattern.permute.xlu0 0
        %921 = vperm.xlu0 %920, %v918
        %v922 = vpop.permute.xlu0 %921
        %v924 = vmul.f32 %v922, %v886
        %v925 = vmul.f32 %v922, %v887
        %v926 = vrot.slane %v924, 4
        %v927 = vadd.f32 %v924, %v926
        %v928 = vrot.slane %v927, 2
        %v929 = vadd.f32 %v927, %v928
        %v930 = vrot.slane %v929, 1
        %v931 = vadd.f32 %v929, %v930
        %v932 = vrot.slane %v925, 4
        %v933 = vadd.f32 %v925, %v932
        %v934 = vrot.slane %v933, 2
        %v935 = vadd.f32 %v933, %v934
        %v936 = vrot.slane %v935, 1
        %v937 = vadd.f32 %v935, %v936
        %v938 = vadd.f32 %v910, %v931
        %v939 = vadd.f32 %v917, %v937
        %v940 = vld [vmem:[#allocation2] sm:$0x1]
        %942 = vset.pattern.permute.xlu0 0
        %943 = vperm.xlu0 %942, %v940
        %v944 = vpop.permute.xlu0 %943
        %v946 = vlaneseq
        %v947 = vshrl.u32 %v946, 7
        %v948 = vsub.s32 0, %v947
        %v949 = vrot.slane %v944, %v948
        %v950 = vadd.f32 %v938, %v949
        %v951 = vadd.f32 %v939, %v949
        %v954 = vcombine.low %v950, %v951
        %v956 = vunpack.c.l.s4 1966171168
        %v957 = vunpack.c.0.s8 %v956
        %v958 = vlaneseq
        %v959 = vshrl.u32 %v958, 7
        %v960 = vsub.s32 %v957, %v959
        %v961 = vrot.slane %v954, %v960
        %v963 = vunpack.c.l.s4 1966171168
        %v964 = vunpack.c.0.s8 %v963
        %v965 = vlaneseq
        %v966 = vshrl.u32 %v965, 7
        %v967 = vsub.s32 %v964, %v966
        %v968 = vrot.slane %v961, %v967
        %v970 = vlaneseq
        %vm971 = vcmp.ge.s32.totalorder %v970, 0
        %vm972 = vcmp.lt.s32.totalorder %v970, 256
        %vm973 = vmand %vm971, %vm972
        %974 = vst.msk [vmem:[%s527] sm:$0x3] %vm973, %v968
        %s975 = sand.u32 %s298, 1
        %s976 = scalar_lea.sflag [#allocation6], %s975
        %s977 = sand.u32 %s298, 1
        %s978 = smul.addr %s977, 2
        %s979 = scalar_lea.vmem [#allocation5], %s978
        // Predicated region
        $region145: #{tpu_custom_call.1} parent=135 // pred_check
          %p980 = pneg %p308
        $region146: #{tpu_custom_call.1} parent=135 // pred_check_branch
          %982 = sbr.rel (%p980) target = $region148
        $region147: #{tpu_custom_call.1} parent=135 // pred_region
          %s983 = smul.u32 2, %s28
          %s985 = ssub.s32 32, 32
          %986 = vsyncadd %s976, %s985
          %s987 = smul.addr %s983, 16
          %s988 = scalar_lea.hbm %s12, %s987
          %s990 = sshll.u32 %s979, 4
          %s991 = int_to_ptr.vmem [resolvable:$true] %s990
          %993 = dma.vmem_to_hbm [thread:$0]  %s991, 32, %s988, %s976
        $region148: #{tpu_custom_call.1} parent=135 // pred_fallthru
          _
      $region136: #{tpu_custom_call.1} parent=5 // pred_fallthru
        _
      %p994 = scmp.le.s32.totalorder 2, %s23
      // Predicated region
      $region149: #{tpu_custom_call.1} parent=5 // pred_check
        %p995 = pneg %p994
      $region150: #{tpu_custom_call.1} parent=5 // pred_check_branch
        %997 = sbr.rel (%p995) target = $region152
      $region151: #{tpu_custom_call.1} parent=5 // pred_region
        %s998 = ssub.s32 %s23, 2
        // Predicated region
        $region153: #{tpu_custom_call.1} parent=151 // pred_check
          %p999 = pneg %p314
        $region154: #{tpu_custom_call.1} parent=151 // pred_check_branch
          %1001 = sbr.rel (%p999) target = $region156
        $region155: #{tpu_custom_call.1} parent=151 // pred_region
          %s1002 = sand.u32 %s299, 1
          %s1003 = scalar_lea.sflag [#allocation6], %s1002
          %s1004 = sand.u32 %s299, 1
          %s1005 = smul.addr %s1004, 2
          %s1006 = scalar_lea.vmem [#allocation5], %s1005
          %1007 = dma.done %s1003, 32
        $region156: #{tpu_custom_call.1} parent=151 // pred_fallthru
          _
      $region152: #{tpu_custom_call.1} parent=5 // pred_fallthru
        _
    $region6: #{tpu_custom_call.1} parent=1 // loop_footer
      %s27 = sadd.s32 1, %s23
    $region7: #{tpu_custom_call.1} parent=1 // loop_footer_branch
      %22 = sbr.rel target = $region3
    $region8: #{tpu_custom_call.1} parent=1 // loop_exit
      _
    %1008 = vsyncpa [#allocation6], 1
    %s1009 = scalar_lea.sflag [#allocation6], 1
    %1010 = vsyncpa %s1009, 1

</llo_original>
